<compile_context>
chip_gen: v5e
topology: v5e:2x2
jax: 0.10.0
libtpu: 0.0.40
codegen_flags: <defaults>
</compile_context>

<pallas_src>
import functools
import math

import jax
import jax.numpy as jnp
from jax import lax
from jax.experimental import pallas as pl
from jax.experimental.pallas import tpu as pltpu


# ----------------------------------------------------------------------------
# Pallas kernel: fused boundary injection + stencil + upwind advection.
# Operates on a lane-dense tile (Nx, lanes) holding lanes//Ny instances side
# by side along the lane axis.
# ----------------------------------------------------------------------------
def _burgers_kernel(scal_ref, s_ref, o_ref, *, ny):
    nx, lanes = s_ref.shape
    s = s_ref[...]                                   # (nx, lanes) f32 tile

    # SMEM scalars: [bc_left, bc_right, bc_bot, bc_top, d_org, inv_dx, inv_dx2]
    bc_left = scal_ref[0]
    bc_right = scal_ref[1]
    bc_bot = scal_ref[2]
    bc_top = scal_ref[3]
    inv_dx = scal_ref[5]
    inv_dx2 = scal_ref[6]

    # d = sigmoid(d_org) * 0.01, folded with 1/dx^2 so the Laplacian combine is
    # one broadcasted multiply.  Kept as a (1,1) vector so the sigmoid rides
    # the (otherwise idle) EUP slot and broadcasts over the tile.
    d_coef = jax.nn.sigmoid(jnp.full((1, 1), scal_ref[4], jnp.float32)) * (
        0.01 * inv_dx2)

    # --- Neighbour values: XLU rolls + Dirichlet boundary injection ----------
    # `lanes` is a multiple of `ny`, so any roll that wraps across an instance
    # (or block) boundary lands exactly on a position the boundary mask
    # overwrites with the bc scalar.
    row = lax.broadcasted_iota(jnp.int32, (nx, lanes), 0)
    col = lax.broadcasted_iota(jnp.int32, (nx, lanes), 1)
    if ny & (ny - 1) == 0:
        col_in = jnp.bitwise_and(col, ny - 1)        # column index within instance
    else:
        col_in = col % ny

    up = jnp.where(row == 0, bc_bot, pltpu.roll(s, shift=1, axis=0))            # p[i-1, j]
    dn = jnp.where(row == nx - 1, bc_top, pltpu.roll(s, shift=nx - 1, axis=0))  # p[i+1, j]
    lf = jnp.where(col_in == 0, bc_left, pltpu.roll(s, shift=1, axis=1))        # p[i, j-1]
    rt = jnp.where(col_in == ny - 1, bc_right,
                   pltpu.roll(s, shift=lanes - 1, axis=1))                      # p[i, j+1]

    # --- Shared stencil algebra (dx == dy in the module) ----------------------
    two_c = s + s
    bwd = two_c - lf - up            # (c - lf) + (c - up)   backward differences
    fwd = rt + dn - two_c            # (rt - c) + (dn - c)   forward differences
    lap_raw = fwd - bwd              # up + dn + lf + rt - 4c

    u_plus = jnp.maximum(s, 0.0)
    u_min = jnp.minimum(s, 0.0)
    adv = (u_plus * bwd + u_min * fwd) * inv_dx

    # Single dense, lane-aligned full-tile store.
    o_ref[...] = lap_raw * d_coef - adv


# ----------------------------------------------------------------------------
# Layout helper: instances are packed along lanes in groups whose width is a
# multiple of 128; blocks hold up to ~512 lanes, and the group count is split
# into >= 2 blocks when it divides evenly (parallel grid -> both v7x TCs).
# ----------------------------------------------------------------------------
def _pick_layout(b, ny):
    ib = 1 if ny % 128 == 0 else 128 // math.gcd(ny, 128)   # instances / group
    padded_b = -(-b // ib) * ib
    groups = padded_b // ib
    group_lanes = ib * ny                                   # multiple of 128
    gpb = 1
    for cand in range(min(max(1, 512 // group_lanes), groups), 0, -1):
        if groups % cand == 0:
            gpb = cand
            break
    if groups // gpb < 2 and groups >= 2 and groups % 2 == 0:
        gpb = groups // 2                                   # keep 2 parallel blocks
    return padded_b, groups // gpb, gpb * group_lanes       # padded_B, n_blocks, lane_block


# ----------------------------------------------------------------------------
# Batched wrapper: B independent states sharing bc / d_org / dx in ONE call.
# ----------------------------------------------------------------------------
@jax.jit
def burgers2d_param_pde_batched(states, bc4, d_org, dx):
    """states: (B, Nx, Ny) f32, bc4: (4,), d_org/dx: scalars -> (B, Nx, Ny)."""
    states = jnp.asarray(states, jnp.float32)
    B, Nx, Ny = states.shape
    padded_b, n_blocks, lane_block = _pick_layout(B, Ny)

    if padded_b != B:
        states = jnp.pad(states, ((0, padded_b - B), (0, 0), (0, 0)))
    # Lane-dense slab (layout plumbing only): slab[i, b*Ny + j] = states[b, i, j].
    slab = jnp.transpose(states, (1, 0, 2)).reshape(Nx, padded_b * Ny)

    dx = jnp.asarray(dx, jnp.float32)
    scal = jnp.concatenate([
        jnp.asarray(bc4, jnp.float32).reshape(4),
        jnp.asarray(d_org, jnp.float32).reshape(1),
        (1.0 / dx).reshape(1),
        (1.0 / (dx * dx)).reshape(1),
    ])

    out = pl.pallas_call(
        functools.partial(_burgers_kernel, ny=Ny),
        out_shape=jax.ShapeDtypeStruct((Nx, padded_b * Ny), jnp.float32),
        grid=(n_blocks,),
        in_specs=[
            pl.BlockSpec(memory_space=pltpu.MemorySpace.SMEM),     # scalars (7,)
            pl.BlockSpec((Nx, lane_block), lambda i: (0, i)),      # state slab
        ],
        out_specs=pl.BlockSpec((Nx, lane_block), lambda i: (0, i)),
        compiler_params=pltpu.CompilerParams(
            dimension_semantics=("parallel",)),
    )(scal, slab)

    out = out.reshape(Nx, padded_b, Ny).transpose(1, 0, 2)
    return out[:B]


# ----------------------------------------------------------------------------
# Module-faithful wrapper (the PyTorch forward): state (1,1,Nx,Ny), bc (1,1,4).
# ----------------------------------------------------------------------------
def burgers2d_param_pde(state, bc, d_org, dx):
    state = jnp.asarray(state, jnp.float32)
    N, C, Nx, Ny = state.shape
    # F.conv2d with a (1,1,3,3) weight and the un-broadcast bc concat force N=C=1.
    assert N == 1 and C == 1
    bc4 = jnp.asarray(bc, jnp.float32)[:1].reshape(-1)[:4]    # matches bc[:1, :, k]
    out = burgers2d_param_pde_batched(state.reshape(1, Nx, Ny), bc4, d_org, dx)
    return out.reshape(N, C, Nx, Ny)


# ----------------------------------------------------------------------------
# Pure-JAX reference (exact f32 slicing, no conv), for validation.
# ----------------------------------------------------------------------------
def _reference(state2d, bc4, d_org, dx):
    d = jax.nn.sigmoid(jnp.asarray(d_org, jnp.float32)) * 0.01
    s = jnp.asarray(state2d, jnp.float32)
    b = jnp.asarray(bc4, jnp.float32).reshape(4)
    Nx, Ny = s.shape
    p = jnp.zeros((Nx + 2, Ny + 2), jnp.float32)
    p = p.at[1:-1, 1:-1].set(s)
    p = p.at[1:-1, 0].set(b[0])       # left column
    p = p.at[1:-1, -1].set(b[1])      # right column
    p = p.at[0, :].set(b[2])          # bottom row (overwrites corners, like torch)
    p = p.at[-1, :].set(b[3])         # top row
    c = p[1:-1, 1:-1]
    up = p[:-2, 1:-1]
    dn = p[2:, 1:-1]
    lf = p[1:-1, :-2]
    rt = p[1:-1, 2:]
    lap = (up + dn + lf + rt - 4.0 * c) / (dx * dx)
    u_plus = jnp.maximum(c, 0.0)
    u_min = jnp.minimum(c, 0.0)
    adv = (u_plus * (c - lf) + u_min * (rt - c)
           + u_plus * (c - up) + u_min * (dn - c)) / dx
    return d * lap - adv


if __name__ == "__main__":
    key = jax.random.PRNGKey(0)
    k1, k2, k3 = jax.random.split(key, 3)

    Nx = Ny = 16
    dx = 1.0 / Nx
    d_org = jnp.float32(-2.0)                       # params_org['d_org'] init

    # (1) Module-faithful single-instance forward: state (1,1,16,16), bc (1,1,4).
    state = jax.random.normal(k1, (1, 1, Nx, Ny), dtype=jnp.float32)
    bc = jax.random.normal(k2, (1, 1, 4), dtype=jnp.float32)
    out = jax.block_until_ready(burgers2d_param_pde(state, bc, d_org, dx))
    assert out.shape == (1, 1, Nx, Ny)
    ref = _reference(state[0, 0], bc.reshape(-1)[:4], d_org, dx)
    err = float(jnp.max(jnp.abs(out[0, 0] - ref)))
    assert jnp.allclose(out[0, 0], ref, atol=1e-3, rtol=1e-3), err

    # (2) Batched lane-dense path: 16 instances sharing bc/d in ONE pallas_call
    #     (two 128-lane blocks, "parallel" grid axis -> both v7x TensorCores).
    B = 16
    states = jax.random.normal(k3, (B, Nx, Ny), dtype=jnp.float32)
    out_b = jax.block_until_ready(
        burgers2d_param_pde_batched(states, bc.reshape(-1)[:4], d_org, dx))
    assert out_b.shape == (B, Nx, Ny)
    ref_b = jax.vmap(lambda s: _reference(s, bc.reshape(-1)[:4], d_org, dx))(states)
    err_b = float(jnp.max(jnp.abs(out_b - ref_b)))
    assert jnp.allclose(out_b, ref_b, atol=1e-3, rtol=1e-3), err_b

    print("KERNEL_OK")
</pallas_src>

<mosaic_0001>
module attributes {stable_mosaic.version = 11 : i64} {
  func.func @_burgers_kernel(%arg0: i32, %arg1: memref<7xf32, #tpu.memory_space<smem>>, %arg2: memref<16x128xf32, #tpu.memory_space<vmem>>, %arg3: memref<16x128xf32, #tpu.memory_space<vmem>>) attributes {dimension_semantics = [#tpu.dimension_semantics<parallel>], iteration_bounds = array<i64: 1>, scalar_prefetch = 0 : i64, scratch_operands = 0 : i64, tpu.core_type = #tpu.core_type<tc>, window_params = [{transform_indices = @transform_0, window_bounds = array<i64: 7>}, {transform_indices = @transform_1, window_bounds = array<i64: 16, 128>}, {transform_indices = @transform_2, window_bounds = array<i64: 16, 128>}]} {
    %c0 = arith.constant 0 : index
    %c0_0 = arith.constant 0 : index
    %0 = vector.load %arg2[%c0, %c0_0] : memref<16x128xf32, #tpu.memory_space<vmem>>, vector<16x128xf32>
    %c0_1 = arith.constant 0 : index
    %1 = memref.load %arg1[%c0_1] : memref<7xf32, #tpu.memory_space<smem>>
    %c1 = arith.constant 1 : index
    %2 = memref.load %arg1[%c1] : memref<7xf32, #tpu.memory_space<smem>>
    %c2 = arith.constant 2 : index
    %3 = memref.load %arg1[%c2] : memref<7xf32, #tpu.memory_space<smem>>
    %c3 = arith.constant 3 : index
    %4 = memref.load %arg1[%c3] : memref<7xf32, #tpu.memory_space<smem>>
    %c5 = arith.constant 5 : index
    %5 = memref.load %arg1[%c5] : memref<7xf32, #tpu.memory_space<smem>>
    %c6 = arith.constant 6 : index
    %6 = memref.load %arg1[%c6] : memref<7xf32, #tpu.memory_space<smem>>
    %c4 = arith.constant 4 : index
    %7 = memref.load %arg1[%c4] : memref<7xf32, #tpu.memory_space<smem>>
    %8 = vector.broadcast %7 : f32 to vector<1x1xf32>
    %9 = arith.negf %8 : vector<1x1xf32>
    %10 = math.exp %9 : vector<1x1xf32>
    %cst = arith.constant 1.000000e+00 : f32
    %11 = vector.broadcast %cst : f32 to vector<1x1xf32>
    %12 = arith.addf %11, %10 : vector<1x1xf32>
    %13 = arith.divf %11, %12 : vector<1x1xf32>
    %cst_2 = arith.constant 0.00999999977 : f32
    %14 = arith.mulf %cst_2, %6 : f32
    %15 = vector.broadcast %14 : f32 to vector<1x1xf32>
    %16 = arith.mulf %13, %15 : vector<1x1xf32>
    %17 = tpu.iota {dimensions = array<i32: 0>} : vector<16x128xi32>
    %18 = tpu.iota {dimensions = array<i32: 1>} : vector<16x128xi32>
    %c15_i32 = arith.constant 15 : i32
    %19 = vector.broadcast %c15_i32 : i32 to vector<16x128xi32>
    %20 = arith.andi %18, %19 : vector<16x128xi32>
    %c0_i32 = arith.constant 0 : i32
    %21 = vector.broadcast %c0_i32 : i32 to vector<16x128xi32>
    %22 = arith.cmpi eq, %17, %21 : vector<16x128xi32>
    %c1_i32 = arith.constant 1 : i32
    %23 = tpu.dynamic_rotate %0 by %c1_i32 dim 0 : vector<16x128xf32>, i32 -> vector<16x128xf32>
    %24 = vector.broadcast %3 : f32 to vector<16x128xf32>
    %25 = arith.select %22, %24, %23 : vector<16x128xi1>, vector<16x128xf32>
    %c15_i32_3 = arith.constant 15 : i32
    %26 = vector.broadcast %c15_i32_3 : i32 to vector<16x128xi32>
    %27 = arith.cmpi eq, %17, %26 : vector<16x128xi32>
    %c15_i32_4 = arith.constant 15 : i32
    %28 = tpu.dynamic_rotate %0 by %c15_i32_4 dim 0 : vector<16x128xf32>, i32 -> vector<16x128xf32>
    %29 = vector.broadcast %4 : f32 to vector<16x128xf32>
    %30 = arith.select %27, %29, %28 : vector<16x128xi1>, vector<16x128xf32>
    %c0_i32_5 = arith.constant 0 : i32
    %31 = vector.broadcast %c0_i32_5 : i32 to vector<16x128xi32>
    %32 = arith.cmpi eq, %20, %31 : vector<16x128xi32>
    %c1_i32_6 = arith.constant 1 : i32
    %33 = tpu.dynamic_rotate %0 by %c1_i32_6 dim 1 : vector<16x128xf32>, i32 -> vector<16x128xf32>
    %34 = vector.broadcast %1 : f32 to vector<16x128xf32>
    %35 = arith.select %32, %34, %33 : vector<16x128xi1>, vector<16x128xf32>
    %c15_i32_7 = arith.constant 15 : i32
    %36 = vector.broadcast %c15_i32_7 : i32 to vector<16x128xi32>
    %37 = arith.cmpi eq, %20, %36 : vector<16x128xi32>
    %c127_i32 = arith.constant 127 : i32
    %38 = tpu.dynamic_rotate %0 by %c127_i32 dim 1 : vector<16x128xf32>, i32 -> vector<16x128xf32>
    %39 = vector.broadcast %2 : f32 to vector<16x128xf32>
    %40 = arith.select %37, %39, %38 : vector<16x128xi1>, vector<16x128xf32>
    %41 = arith.addf %0, %0 : vector<16x128xf32>
    %42 = arith.subf %41, %35 : vector<16x128xf32>
    %43 = arith.subf %42, %25 : vector<16x128xf32>
    %44 = arith.addf %40, %30 : vector<16x128xf32>
    %45 = arith.subf %44, %41 : vector<16x128xf32>
    %46 = arith.subf %45, %43 : vector<16x128xf32>
    %cst_8 = arith.constant 0.000000e+00 : f32
    %47 = vector.broadcast %cst_8 : f32 to vector<16x128xf32>
    %48 = arith.maximumf %0, %47 : vector<16x128xf32>
    %cst_9 = arith.constant 0.000000e+00 : f32
    %49 = vector.broadcast %cst_9 : f32 to vector<16x128xf32>
    %50 = arith.minimumf %0, %49 : vector<16x128xf32>
    %51 = arith.mulf %48, %43 : vector<16x128xf32>
    %52 = arith.mulf %50, %45 : vector<16x128xf32>
    %53 = arith.addf %51, %52 : vector<16x128xf32>
    %54 = vector.broadcast %5 : f32 to vector<16x128xf32>
    %55 = arith.mulf %53, %54 : vector<16x128xf32>
    %56 = vector.broadcast %16 : vector<1x1xf32> to vector<16x128xf32>
    %57 = arith.mulf %46, %56 : vector<16x128xf32>
    %58 = arith.subf %57, %55 : vector<16x128xf32>
    %c0_10 = arith.constant 0 : index
    %c0_11 = arith.constant 0 : index
    %59 = vector.load %arg3[%c0_10, %c0_11] : memref<16x128xf32, #tpu.memory_space<vmem>>, vector<16x128xf32>
    tpu.vector_store %arg3[%c0_10, %c0_11], %58 {strides = array<i32>} : memref<16x128xf32, #tpu.memory_space<vmem>>, vector<16x128xf32>,
    return
  }
  func.func @transform_0(%arg0: i32) -> i32 {
    %c0_i32 = arith.constant 0 : i32
    %c0_i32_0 = arith.constant 0 : i32
    return %c0_i32 : i32
  }
  func.func @transform_1(%arg0: i32) -> (i32, i32) {
    %c0_i32 = arith.constant 0 : i32
    %c0_i32_0 = arith.constant 0 : i32
    return %c0_i32, %arg0 : i32, i32
  }
  func.func @transform_2(%arg0: i32) -> (i32, i32) {
    %c0_i32 = arith.constant 0 : i32
    %c0_i32_0 = arith.constant 0 : i32
    return %c0_i32, %arg0 : i32, i32
  }
}

</mosaic_0001>

<llo_original>
// kernel: burgers2d_param_pde_batched.1
$region0: #{burgers2d_param_pde_batched.1}
  #allocation0 [shape = 'u32[]', space=smem, size = 0x4, offset = 0x4, fixed_abs, tag = 'smem constant byte address 0x4 - core index']
  #allocation1 [shape = 'u32[72,128]{1,0:T(1,128)}', space=vmem, size = 0x9000, scoped, tag = 'internal scratch']
  %s0 = inlined_call_operand.vmem [shape: f32[7], index: 0, kind: input, shape index: {}]
  %s1 = inlined_call_operand.vmem [shape: f32[16,128], index: 1, kind: input, shape index: {}]
  %s2 = inlined_call_operand.vmem [shape: f32[16,128], index: 2, kind: output, shape index: {}]
  %s3 = sld [smem:[#allocation0]]
  $region22: #{burgers2d_param_pde_batched.1} parent=0
    _
  %s5 = ssub.s32 1, %s3
  %s6 = scalar_select 0, %s5, %s3
  $region1: #{burgers2d_param_pde_batched.1} parent=0
    #allocation2 [shape = 'u8[512]{0}', space=smem, size = 0x200, scoped, tag = 'input window, operand 0, single buffered']
    #allocation3 [shape = 's32[1]{0}', space=sflag, size = 0x4, scoped, tag = 'scoped memory for burgers2d_param_pde_batched.1']
    %7 = vsyncpa [#allocation3], 0
    // Predicated region
    $region2: #{burgers2d_param_pde_batched.1} parent=1 // pred_check
      _
    $region3: #{burgers2d_param_pde_batched.1} parent=1 // pred_check_branch
      %9 = sbr.rel (0) target = $region5
    $region4: #{burgers2d_param_pde_batched.1} parent=1 // pred_region
      %11 = vsyncadd [#allocation3], 0
      %s13 = sshll.u32 %s0, 4
      %s14 = int_to_ptr.vmem [resolvable:$true] %s13
      %16 = dma.vmem_to_smem %s14, 16, [#allocation2], [#allocation3]
    $region5: #{burgers2d_param_pde_batched.1} parent=1 // pred_fallthru
      _
    // Predicated region
    $region6: #{burgers2d_param_pde_batched.1} parent=1 // pred_check
      _
    $region7: #{burgers2d_param_pde_batched.1} parent=1 // pred_check_branch
      %18 = sbr.rel (0) target = $region9
    $region8: #{burgers2d_param_pde_batched.1} parent=1 // pred_region
      _
    $region9: #{burgers2d_param_pde_batched.1} parent=1 // pred_fallthru
      _
    // Predicated region
    $region10: #{burgers2d_param_pde_batched.1} parent=1 // pred_check
      _
    $region11: #{burgers2d_param_pde_batched.1} parent=1 // pred_check_branch
      %20 = sbr.rel (0) target = $region13
    $region12: #{burgers2d_param_pde_batched.1} parent=1 // pred_region
      %22 = dma.done [#allocation3], 16
    $region13: #{burgers2d_param_pde_batched.1} parent=1 // pred_fallthru
      _
    %23 = sfence
    %v24 = vld [vmem:[%s1] sm:$0xff]
    %v25 = vld [vmem:[%s1 + $0x8] sm:$0xff]
    %s26 = sld [smem:[#allocation2]]
    %s27 = sld [smem:[#allocation2 + $0x1]]
    %s28 = sld [smem:[#allocation2 + $0x2]]
    %s29 = sld [smem:[#allocation2 + $0x3]]
    %s30 = sld [smem:[#allocation2 + $0x5]]
    %s31 = sld [smem:[#allocation2 + $0x6]]
    %s32 = sld [smem:[#allocation2 + $0x4]]
    %v33 = vstv %s32
    %v34 = vxor.u32 %v33, 2147483648
    %v35 = vmul.f32 %v34, 1.442695
    %v36 = vpow.pop %v35
    %v37 = vadd.f32 %v36, 1.0
    %v38 = vrcp.pop %v37
    %v39 = vmul.f32 %v37, %v38
    %v40 = vsub.f32 1.0, %v39
    %v41 = vmul.f32 %v38, %v40
    %v42 = vadd.f32 %v38, %v41
    %vm43 = vweird.f32 %v37
    %vm44 = vweird.f32 %v38
    %vm45 = vmor %vm43, %vm44
    %v46 = vsel %vm45, %v38, %v42
    %v47 = vand.u32 2147483647, %v37
    %vm48 = vcmp.eq.f32.partialorder %v47, 8.507059e+37
    %v49 = vand.u32 %v37, 2147483648
    %v50 = vor.u32 1.1754944e-38, %v49
    %v51 = vsel %vm48, %v50, %v46
    %v52 = vmul.f32 1.0, %v51
    %s53 = smul.f32 %s31, 0.01
    %v54 = vstv %s53
    %v55 = vmul.f32 %v52, %v54
    %v56 = vlaneseq
    %v57 = vshrl.u32 %v56, 7
    %v58 = vadd.s32 %v57, 8
    %v59 = vlaneseq
    %v60 = vand.u32 %v59, 127
    %v61 = vand.u32 %v60, 15
    %vm62 = vcmp.eq.s32.totalorder %v57, 0
    %vm63 = vcmp.eq.s32.totalorder %v58, 0
    %v64 = vrot.slane %v24, 7
    %v65 = vrot.slane %v25, 7
    %vm66 = vcmp.lt.s32.totalorder %v57, 1
    %v67 = vsel %vm66, %v64, %v65
    %v68 = vsel %vm66, %v65, %v64
    %v69 = vstv %s28
    %v70 = vsel %vm62, %v69, %v68
    %v71 = vsel %vm63, %v69, %v67
    %vm72 = vcmp.eq.s32.totalorder %v57, 15
    %vm73 = vcmp.eq.s32.totalorder %v58, 15
    %v74 = vrot.slane %v24, 1
    %v75 = vrot.slane %v25, 1
    %vm76 = vcmp.lt.s32.totalorder %v57, 7
    %v77 = vsel %vm76, %v74, %v75
    %v78 = vsel %vm76, %v75, %v74
    %v79 = vstv %s29
    %v80 = vsel %vm72, %v79, %v77
    %v81 = vsel %vm73, %v79, %v78
    %vm82 = vcmp.eq.s32.totalorder %v61, 0
    %83 = vrot.lane.b32.xlu0 %v24, 1
    %v84 = vpop.permute.xlu0 %83
    %85 = vrot.lane.b32.xlu0 %v25, 1
    %v86 = vpop.permute.xlu0 %85
    %v87 = vstv %s26
    %v88 = vsel %vm82, %v87, %v84
    %v89 = vsel %vm82, %v87, %v86
    %vm90 = vcmp.eq.s32.totalorder %v61, 15
    %91 = vrot.lane.b32.xlu0 %v24, 127
    %v92 = vpop.permute.xlu0 %91
    %93 = vrot.lane.b32.xlu0 %v25, 127
    %v94 = vpop.permute.xlu0 %93
    %v95 = vstv %s27
    %v96 = vsel %vm90, %v95, %v92
    %v97 = vsel %vm90, %v95, %v94
    %v98 = vadd.f32 %v24, %v24
    %v99 = vadd.f32 %v25, %v25
    %v100 = vsub.f32 %v98, %v88
    %v101 = vsub.f32 %v99, %v89
    %v102 = vsub.f32 %v100, %v70
    %v103 = vsub.f32 %v101, %v71
    %v104 = vadd.f32 %v96, %v80
    %v105 = vadd.f32 %v97, %v81
    %v106 = vsub.f32 %v104, %v98
    %v107 = vsub.f32 %v105, %v99
    %v108 = vsub.f32 %v106, %v102
    %v109 = vsub.f32 %v107, %v103
    %v110 = vmax.f32 %v24, 0.0
    %v111 = vmax.f32 %v25, 0.0
    %v112 = vmin.f32 %v24, 0.0
    %v113 = vmin.f32 %v25, 0.0
    %v114 = vmul.f32 %v110, %v102
    %v115 = vmul.f32 %v111, %v103
    %v116 = vmul.f32 %v112, %v106
    %v117 = vmul.f32 %v113, %v107
    %v118 = vadd.f32 %v114, %v116
    %v119 = vadd.f32 %v115, %v117
    %v120 = vstv %s30
    %v121 = vmul.f32 %v118, %v120
    %v122 = vmul.f32 %v119, %v120
    %v123 = vmul.f32 %v108, %v55
    %v124 = vmul.f32 %v109, %v55
    %v125 = vsub.f32 %v123, %v121
    %v126 = vsub.f32 %v124, %v122
    %127 = vst [vmem:[%s2] sm:$0xff] %v125
    %128 = vst [vmem:[%s2 + $0x8] sm:$0xff] %v126
    // Predicated region
    $region14: #{burgers2d_param_pde_batched.1} parent=1 // pred_check
      _
    $region15: #{burgers2d_param_pde_batched.1} parent=1 // pred_check_branch
      %130 = sbr.rel (0) target = $region17
    $region16: #{burgers2d_param_pde_batched.1} parent=1 // pred_region
      _
    $region17: #{burgers2d_param_pde_batched.1} parent=1 // pred_fallthru
      _
    // Predicated region
    $region18: #{burgers2d_param_pde_batched.1} parent=1 // pred_check
      _
    $region19: #{burgers2d_param_pde_batched.1} parent=1 // pred_check_branch
      %132 = sbr.rel (0) target = $region21
    $region20: #{burgers2d_param_pde_batched.1} parent=1 // pred_region
      _
    $region21: #{burgers2d_param_pde_batched.1} parent=1 // pred_fallthru
      _
    %133 = vsyncpa [#allocation3], 1

</llo_original>
